<compile_context>
chip_gen: v7x
topology: tpu7x:2x2x1
jax: 0.10.0
libtpu: 0.0.40
codegen_flags: <defaults>
</compile_context>

<pallas_src>
import jax
import jax.numpy as jnp
from jax.experimental import pallas as pl
from jax.experimental.pallas import tpu as pltpu


def _dsb_kernel(xm_ref, xt_ref, w_ref, scale_mp_ref, shift_ref, o_ref):
    """Fused conv3x3(s2) + maxpool2x2(s2) + concat + BN + ReLU for one row tile.

    xm_ref:       [1, TR, 2, Wout, 2*Cin]  main window; dim-2 = input-row parity,
                                           lane dim = [col 2p | col 2p+1] x Cin
    xt_ref:       [1, 1, 1, Wout, 2*Cin]   top halo (odd input row just above the
                                           tile; garbage for tile 0 -> masked)
    w_ref:        [9*Cin, Cconv]           conv weights, BN scale folded, bf16,
                                           K order = (kh, kw, cin)
    scale_mp_ref: [1, Cin]                 BN scale for the max-pool channels
    shift_ref:    [1, Cout]                BN shift (all channels)
    o_ref:        [1, TR, Wout, Cout]
    """
    i = pl.program_id(1)
    _, TR, _, Wout, C2 = xm_ref.shape
    Cin = C2 // 2
    Cout = o_ref.shape[-1]

    # f32 row-parity slabs, loaded once and shared by both branches.
    E = xm_ref[0, :, 0]                       # [TR, Wout, 2*Cin]  input rows 2R
    O = xm_ref[0, :, 1]                       # [TR, Wout, 2*Cin]  input rows 2R+1
    T = xt_ref[0, :, 0]                       # [1,  Wout, 2*Cin]  input row 2*R0-1

    # ---- max-pool branch: exact f32, pure VPU (no matmul, no placement matrix).
    mp = jnp.maximum(jnp.maximum(E[..., :Cin], E[..., Cin:]),
                     jnp.maximum(O[..., :Cin], O[..., Cin:]))
    mp = mp.reshape(TR * Wout, Cin) * scale_mp_ref[...]

    # ---- conv branch: cast once to bf16, build the 9-tap im2col LHS, ONE matmul.
    Eb = E.astype(jnp.bfloat16)
    Ob = O.astype(jnp.bfloat16)
    Tb = (T * (i > 0).astype(jnp.float32)).astype(jnp.bfloat16)   # tile 0: zero pad
    Pb = jnp.concatenate([Tb, Ob[:TR - 1]], axis=0) if TR > 1 else Tb   # rows 2R-1

    zero_col = jnp.zeros((TR, 1, Cin), jnp.bfloat16)

    def shift_right(slab):                    # cols 2p-1 (odd cols of column p-1)
        if Wout == 1:
            return zero_col
        return jnp.concatenate([zero_col, slab[:, :Wout - 1, Cin:]], axis=1)

    # K-axis order matches w_conv.reshape(9*Cin, Cconv): (kh, kw, cin).
    lhs = jnp.concatenate(
        [shift_right(Pb), Pb,                 # kh=0: kw=0 | kw=1, kw=2
         shift_right(Eb), Eb,                 # kh=1
         shift_right(Ob), Ob],                # kh=2
        axis=-1).reshape(TR * Wout, 9 * Cin)
    conv = jnp.dot(lhs, w_ref[...], preferred_element_type=jnp.float32)

    # ---- channel concat + BN shift + ReLU, single store of the full tile.
    y = jnp.maximum(jnp.concatenate([conv, mp], axis=-1) + shift_ref[...], 0.0)
    o_ref[0] = y.reshape(TR, Wout, Cout).astype(o_ref.dtype)


def _pick_row_tile(Hout, Wout, Cin, Cout, out_itemsize, vmem_limit_bytes):
    """Largest divisor of Hout whose per-step footprint fits comfortably in VMEM."""
    budget = int(0.5 * vmem_limit_bytes)
    best = 1
    for tr in range(1, Hout + 1):
        if Hout % tr:
            continue
        tile_in = 4 * tr * Wout * Cin * 4                  # f32 input rows (main block)
        tile_out = tr * Wout * Cout * out_itemsize
        tile_tmp = tr * Wout * (9 * Cin * 2 + 2 * Cout * 4)  # bf16 im2col + f32 temps
        if 2 * (tile_in + tile_out) + 3 * tile_tmp <= budget:
            best = tr
    return best


def down_sampling_block_forward(x, w_conv, scale, shift, *,
                                row_tile=None,
                                vmem_limit_bytes=32 * 1024 * 1024):
    """x: [B, H, W, Cin] (NHWC), w_conv: [3, 3, Cin, Cout-Cin] (HWIO),
    scale/shift: [Cout] folded eval-mode BatchNorm.  Returns [B, H/2, W/2, Cout]."""
    B, H, W, Cin = x.shape
    kh, kw, cin_w, Cconv = w_conv.shape
    Cout = Cconv + Cin
    assert (kh, kw, cin_w) == (3, 3, Cin)
    assert Cconv >= 1, "requires oupc > inpc"
    assert scale.shape == (Cout,) and shift.shape == (Cout,)
    assert H % 2 == 0 and W % 2 == 0, "even spatial dims required"
    Hout, Wout = H // 2, W // 2

    if row_tile is None:
        row_tile = _pick_row_tile(Hout, Wout, Cin, Cout,
                                  jnp.dtype(x.dtype).itemsize, vmem_limit_bytes)
    TR = max(1, min(row_tile, Hout))
    assert Hout % TR == 0, "ragged row tiles not supported"   # TODO(synk)
    n_tiles = Hout // TR

    # Zero-copy (metadata-only) view: x5[b, h, rp, w, cp*Cin + c] == x[b, 2h+rp, 2w+cp, c]
    x5 = x.reshape(B, Hout, 2, Wout, 2 * Cin)

    # Fold BN scale of the conv channels into a single [9*Cin, Cconv] bf16 matrix
    # so the kernel runs ONE fused MXU matmul per tile.  Max-pool channel scale
    # stays a small f32 vector (applied on the VPU).
    scale_c, scale_m = scale[:Cconv], scale[Cconv:]
    w_fold = (w_conv * scale_c).reshape(9 * Cin, Cconv).astype(jnp.bfloat16)
    scale_m2 = scale_m.reshape(1, Cin).astype(jnp.float32)
    shift2 = shift.reshape(1, Cout).astype(jnp.float32)

    return pl.pallas_call(
        _dsb_kernel,
        out_shape=jax.ShapeDtypeStruct((B, Hout, Wout, Cout), x.dtype),
        grid_spec=pltpu.PrefetchScalarGridSpec(
            num_scalar_prefetch=0,
            grid=(B, n_tiles),
            in_specs=[
                # main window: TR output rows' worth of input rows (both parities)
                pl.BlockSpec((1, TR, 2, Wout, 2 * Cin),
                             lambda b, i: (b, i, 0, 0, 0)),
                # top halo: odd input row above the tile (clamped; masked for i==0)
                pl.BlockSpec((1, 1, 1, Wout, 2 * Cin),
                             lambda b, i: (b, jnp.maximum(i * TR - 1, 0), 1, 0, 0)),
                # resident weights / BN params (constant index maps)
                pl.BlockSpec((9 * Cin, Cconv), lambda b, i: (0, 0)),
                pl.BlockSpec((1, Cin), lambda b, i: (0, 0)),
                pl.BlockSpec((1, Cout), lambda b, i: (0, 0)),
            ],
            out_specs=pl.BlockSpec((1, TR, Wout, Cout), lambda b, i: (b, i, 0, 0)),
        ),
        compiler_params=pltpu.CompilerParams(
            dimension_semantics=("parallel", "parallel"),
            vmem_limit_bytes=vmem_limit_bytes),
    )(x5, x5, w_fold, scale_m2, shift2)


def _reference(x, w_conv, scale, shift):
    """Pure-JAX/XLA reference (bf16-rounded conv inputs, f32 accumulation,
    exact f32 max-pool) matching the kernel's numerics."""
    B, H, W, Cin = x.shape
    Cconv = w_conv.shape[-1]
    scale_c, scale_m = scale[:Cconv], scale[Cconv:]
    shift_c, shift_m = shift[:Cconv], shift[Cconv:]
    w_bf = (w_conv * scale_c).astype(jnp.bfloat16).astype(jnp.float32)
    conv = jax.lax.conv_general_dilated(
        x.astype(jnp.bfloat16).astype(jnp.float32), w_bf,
        window_strides=(2, 2), padding=((1, 1), (1, 1)),
        dimension_numbers=("NHWC", "HWIO", "NHWC"))
    conv = conv + shift_c
    mp = x.reshape(B, H // 2, 2, W // 2, 2, Cin).max(axis=(2, 4))
    mp = mp * scale_m + shift_m
    return jnp.maximum(jnp.concatenate([conv, mp], axis=-1), 0.0)


if __name__ == "__main__":
    B, H, W = 2, 16, 16
    inpc, oupc = 16, 32            # down_sampling_block(inpc, oupc)
    key = jax.random.PRNGKey(0)
    kx, kw_, kg, kb, km, kv = jax.random.split(key, 6)

    x = jax.random.normal(kx, (B, H, W, inpc), jnp.float32)              # NHWC
    w_conv = 0.1 * jax.random.normal(kw_, (3, 3, inpc, oupc - inpc), jnp.float32)
    # eval-mode BatchNorm2d(oupc, eps=1e-3) folded to per-channel scale/shift
    gamma = 1.0 + 0.1 * jax.random.normal(kg, (oupc,), jnp.float32)
    beta = 0.1 * jax.random.normal(kb, (oupc,), jnp.float32)
    mean = 0.1 * jax.random.normal(km, (oupc,), jnp.float32)
    var = jnp.abs(jax.random.normal(kv, (oupc,), jnp.float32)) + 0.5
    scale = gamma / jnp.sqrt(var + 1e-3)
    shift = beta - mean * scale

    fwd = jax.jit(down_sampling_block_forward,
                  static_argnames=("row_tile", "vmem_limit_bytes"))
    ref = _reference(x, w_conv, scale, shift)

    # Auto row tile (single tile per image: exercises the zero-pad halo path).
    out = jax.block_until_ready(fwd(x, w_conv, scale, shift))
    assert out.shape == (B, H // 2, W // 2, oupc)
    assert jnp.allclose(out, ref, atol=1e-3, rtol=1e-3), "mismatch (row_tile=auto)"

    # Multiple row tiles per image (exercises the real halo-row path).
    out2 = jax.block_until_ready(fwd(x, w_conv, scale, shift, row_tile=2))
    assert jnp.allclose(out2, ref, atol=1e-3, rtol=1e-3), "mismatch (row_tile=2)"

    print("KERNEL_OK")
</pallas_src>

<mosaic_0001>
module attributes {stable_mosaic.version = 11 : i64} {
  func.func @_dsb_kernel(%arg0: i32, %arg1: i32, %arg2: memref<1x8x2x8x32xf32, #tpu.memory_space<vmem>>, %arg3: memref<1x1x1x8x32xf32, #tpu.memory_space<vmem>>, %arg4: memref<144x16xbf16, #tpu.memory_space<vmem>>, %arg5: memref<1x16xf32, #tpu.memory_space<vmem>>, %arg6: memref<1x32xf32, #tpu.memory_space<vmem>>, %arg7: memref<1x8x8x32xf32, #tpu.memory_space<vmem>>) attributes {dimension_semantics = [#tpu.dimension_semantics<parallel>, #tpu.dimension_semantics<parallel>], iteration_bounds = array<i64: 2, 1>, scalar_prefetch = 0 : i64, scratch_operands = 0 : i64, tpu.core_type = #tpu.core_type<tc>, window_params = [{transform_indices = @transform_0, window_bounds = array<i64: 1, 8, 2, 8, 32>}, {transform_indices = @transform_1, window_bounds = array<i64: 1, 1, 1, 8, 32>}, {pipeline_mode = #tpu.pipeline_mode<synchronous>, transform_indices = @transform_2, window_bounds = array<i64: 144, 16>}, {pipeline_mode = #tpu.pipeline_mode<synchronous>, transform_indices = @transform_3, window_bounds = array<i64: 1, 16>}, {pipeline_mode = #tpu.pipeline_mode<synchronous>, transform_indices = @transform_4, window_bounds = array<i64: 1, 32>}, {transform_indices = @transform_5, window_bounds = array<i64: 1, 8, 8, 32>}]} {
    %c0 = arith.constant 0 : index
    %c0_0 = arith.constant 0 : index
    %c0_1 = arith.constant 0 : index
    %c0_2 = arith.constant 0 : index
    %c0_3 = arith.constant 0 : index
    %0 = vector.load %arg2[%c0, %c0_0, %c0_1, %c0_2, %c0_3] : memref<1x8x2x8x32xf32, #tpu.memory_space<vmem>>, vector<1x8x1x8x32xf32>
    %1 = vector.shape_cast %0 : vector<1x8x1x8x32xf32> to vector<8x8x32xf32>
    %c0_4 = arith.constant 0 : index
    %c0_5 = arith.constant 0 : index
    %c1 = arith.constant 1 : index
    %c0_6 = arith.constant 0 : index
    %c0_7 = arith.constant 0 : index
    %2 = vector.load %arg2[%c0_4, %c0_5, %c1, %c0_6, %c0_7] : memref<1x8x2x8x32xf32, #tpu.memory_space<vmem>>, vector<1x8x1x8x32xf32>
    %3 = vector.shape_cast %2 : vector<1x8x1x8x32xf32> to vector<8x8x32xf32>
    %c0_8 = arith.constant 0 : index
    %c0_9 = arith.constant 0 : index
    %c0_10 = arith.constant 0 : index
    %c0_11 = arith.constant 0 : index
    %c0_12 = arith.constant 0 : index
    %4 = vector.load %arg3[%c0_8, %c0_9, %c0_10, %c0_11, %c0_12] : memref<1x1x1x8x32xf32, #tpu.memory_space<vmem>>, vector<1x1x1x8x32xf32>
    %5 = vector.shape_cast %4 : vector<1x1x1x8x32xf32> to vector<1x8x32xf32>
    %6 = vector.extract_strided_slice %1 {offsets = [0, 0, 0], sizes = [8, 8, 16], strides = [1, 1, 1]} : vector<8x8x32xf32> to vector<8x8x16xf32>
    %7 = vector.extract_strided_slice %1 {offsets = [0, 0, 16], sizes = [8, 8, 16], strides = [1, 1, 1]} : vector<8x8x32xf32> to vector<8x8x16xf32>
    %8 = arith.maximumf %6, %7 : vector<8x8x16xf32>
    %9 = vector.extract_strided_slice %3 {offsets = [0, 0, 0], sizes = [8, 8, 16], strides = [1, 1, 1]} : vector<8x8x32xf32> to vector<8x8x16xf32>
    %10 = vector.extract_strided_slice %3 {offsets = [0, 0, 16], sizes = [8, 8, 16], strides = [1, 1, 1]} : vector<8x8x32xf32> to vector<8x8x16xf32>
    %11 = arith.maximumf %9, %10 : vector<8x8x16xf32>
    %12 = arith.maximumf %8, %11 : vector<8x8x16xf32>
    %13 = vector.shape_cast %12 : vector<8x8x16xf32> to vector<64x16xf32>
    %c0_13 = arith.constant 0 : index
    %c0_14 = arith.constant 0 : index
    %14 = vector.load %arg5[%c0_13, %c0_14] : memref<1x16xf32, #tpu.memory_space<vmem>>, vector<1x16xf32>
    %15 = vector.broadcast %14 : vector<1x16xf32> to vector<64x16xf32>
    %16 = arith.mulf %13, %15 : vector<64x16xf32>
    %17 = arith.truncf %1 : vector<8x8x32xf32> to vector<8x8x32xbf16>
    %18 = arith.truncf %3 : vector<8x8x32xf32> to vector<8x8x32xbf16>
    %c0_i32 = arith.constant 0 : i32
    %19 = arith.cmpi sgt, %arg1, %c0_i32 : i32
    %20 = arith.extui %19 : i1 to i32
    %21 = arith.sitofp %20 : i32 to f32
    %22 = vector.broadcast %21 : f32 to vector<1x8x32xf32>
    %23 = arith.mulf %5, %22 : vector<1x8x32xf32>
    %24 = arith.truncf %23 : vector<1x8x32xf32> to vector<1x8x32xbf16>
    %25 = vector.extract_strided_slice %18 {offsets = [0, 0, 0], sizes = [7, 8, 32], strides = [1, 1, 1]} : vector<8x8x32xbf16> to vector<7x8x32xbf16>
    %26 = tpu.concatenate %24, %25 in 0 : vector<1x8x32xbf16>, vector<7x8x32xbf16> -> vector<8x8x32xbf16>
    %cst = arith.constant 0.000000e+00 : bf16
    %27 = vector.broadcast %cst : bf16 to vector<8x1x16xbf16>
    %28 = vector.extract_strided_slice %26 {offsets = [0, 0, 16], sizes = [8, 7, 16], strides = [1, 1, 1]} : vector<8x8x32xbf16> to vector<8x7x16xbf16>
    %29 = tpu.concatenate %27, %28 in 1 : vector<8x1x16xbf16>, vector<8x7x16xbf16> -> vector<8x8x16xbf16>
    %30 = vector.extract_strided_slice %17 {offsets = [0, 0, 16], sizes = [8, 7, 16], strides = [1, 1, 1]} : vector<8x8x32xbf16> to vector<8x7x16xbf16>
    %31 = tpu.concatenate %27, %30 in 1 : vector<8x1x16xbf16>, vector<8x7x16xbf16> -> vector<8x8x16xbf16>
    %32 = vector.extract_strided_slice %18 {offsets = [0, 0, 16], sizes = [8, 7, 16], strides = [1, 1, 1]} : vector<8x8x32xbf16> to vector<8x7x16xbf16>
    %33 = tpu.concatenate %27, %32 in 1 : vector<8x1x16xbf16>, vector<8x7x16xbf16> -> vector<8x8x16xbf16>
    %34 = tpu.concatenate %29, %26, %31, %17, %33, %18 in 2 : vector<8x8x16xbf16>, vector<8x8x32xbf16>, vector<8x8x16xbf16>, vector<8x8x32xbf16>, vector<8x8x16xbf16>, vector<8x8x32xbf16> -> vector<8x8x144xbf16>
    %35 = vector.shape_cast %34 : vector<8x8x144xbf16> to vector<64x144xbf16>
    %c0_15 = arith.constant 0 : index
    %c0_16 = arith.constant 0 : index
    %36 = vector.load %arg4[%c0_15, %c0_16] : memref<144x16xbf16, #tpu.memory_space<vmem>>, vector<144x16xbf16>
    %cst_17 = arith.constant dense<0.000000e+00> : vector<64x16xf32>
    %37 = tpu.matmul %35, %36, %cst_17 {dimension_numbers = #tpu.dot_dimension_numbers<[1], [0], [0], [1], [0, 0, 1, 1], [], []>} : vector<64x144xbf16>, vector<144x16xbf16>, vector<64x16xf32> -> vector<64x16xf32>
    %38 = tpu.concatenate %37, %16 in 1 : vector<64x16xf32>, vector<64x16xf32> -> vector<64x32xf32>
    %c0_18 = arith.constant 0 : index
    %c0_19 = arith.constant 0 : index
    %39 = vector.load %arg6[%c0_18, %c0_19] : memref<1x32xf32, #tpu.memory_space<vmem>>, vector<1x32xf32>
    %40 = vector.broadcast %39 : vector<1x32xf32> to vector<64x32xf32>
    %41 = arith.addf %38, %40 : vector<64x32xf32>
    %cst_20 = arith.constant 0.000000e+00 : f32
    %42 = vector.broadcast %cst_20 : f32 to vector<64x32xf32>
    %43 = arith.maximumf %41, %42 : vector<64x32xf32>
    %44 = vector.shape_cast %43 : vector<64x32xf32> to vector<8x8x32xf32>
    %c0_21 = arith.constant 0 : index
    %c0_22 = arith.constant 0 : index
    %c0_23 = arith.constant 0 : index
    %c0_24 = arith.constant 0 : index
    %45 = vector.load %arg7[%c0_21, %c0_22, %c0_23, %c0_24] : memref<1x8x8x32xf32, #tpu.memory_space<vmem>>, vector<1x8x8x32xf32>
    %46 = vector.shape_cast %45 : vector<1x8x8x32xf32> to vector<8x8x32xf32>
    %47 = vector.shape_cast %44 : vector<8x8x32xf32> to vector<1x8x8x32xf32>
    tpu.vector_store %arg7[%c0_21, %c0_22, %c0_23, %c0_24], %47 {strides = array<i32>} : memref<1x8x8x32xf32, #tpu.memory_space<vmem>>, vector<1x8x8x32xf32>,
    return
  }
  func.func @transform_0(%arg0: i32, %arg1: i32) -> (i32, i32, i32, i32, i32) {
    %c0_i32 = arith.constant 0 : i32
    %c0_i32_0 = arith.constant 0 : i32
    %c0_i32_1 = arith.constant 0 : i32
    %c0_i32_2 = arith.constant 0 : i32
    return %arg0, %arg1, %c0_i32, %c0_i32_0, %c0_i32_1 : i32, i32, i32, i32, i32
  }
  func.func @transform_1(%arg0: i32, %arg1: i32) -> (i32, i32, i32, i32, i32) {
    %c8_i32 = arith.constant 8 : i32
    %0 = arith.muli %arg1, %c8_i32 : i32
    %c1_i32 = arith.constant 1 : i32
    %1 = arith.subi %0, %c1_i32 : i32
    %c0_i32 = arith.constant 0 : i32
    %2 = arith.maxsi %1, %c0_i32 : i32
    %c1_i32_0 = arith.constant 1 : i32
    %c0_i32_1 = arith.constant 0 : i32
    %c0_i32_2 = arith.constant 0 : i32
    %c0_i32_3 = arith.constant 0 : i32
    return %arg0, %2, %c1_i32_0, %c0_i32_1, %c0_i32_2 : i32, i32, i32, i32, i32
  }
  func.func @transform_2(%arg0: i32, %arg1: i32) -> (i32, i32) {
    %c0_i32 = arith.constant 0 : i32
    %c0_i32_0 = arith.constant 0 : i32
    %c0_i32_1 = arith.constant 0 : i32
    return %c0_i32, %c0_i32_0 : i32, i32
  }
  func.func @transform_3(%arg0: i32, %arg1: i32) -> (i32, i32) {
    %c0_i32 = arith.constant 0 : i32
    %c0_i32_0 = arith.constant 0 : i32
    %c0_i32_1 = arith.constant 0 : i32
    return %c0_i32, %c0_i32_0 : i32, i32
  }
  func.func @transform_4(%arg0: i32, %arg1: i32) -> (i32, i32) {
    %c0_i32 = arith.constant 0 : i32
    %c0_i32_0 = arith.constant 0 : i32
    %c0_i32_1 = arith.constant 0 : i32
    return %c0_i32, %c0_i32_0 : i32, i32
  }
  func.func @transform_5(%arg0: i32, %arg1: i32) -> (i32, i32, i32, i32) {
    %c0_i32 = arith.constant 0 : i32
    %c0_i32_0 = arith.constant 0 : i32
    %c0_i32_1 = arith.constant 0 : i32
    return %arg0, %arg1, %c0_i32, %c0_i32_0 : i32, i32, i32, i32
  }
}

</mosaic_0001>

<llo_original>
// kernel: down_sampling_block_forward.1
$region0: #{down_sampling_block_forward.1}
  #allocation0 [shape = 'u32[]', space=smem, size = 0x4, offset = 0x4, fixed_abs, tag = 'smem constant byte address 0x4 - core index']
  #allocation1 [shape = 'u32[144,128]{1,0:T(1,128)}', space=vmem, size = 0x12000, scoped, tag = 'internal scratch']
  %s0 = inlined_call_operand.vmem [shape: f32[2,8,2,8,32], index: 0, kind: input, shape index: {}, may-alias: {0,1}]
  %s1 = inlined_call_operand.vmem [shape: f32[2,8,2,8,32], index: 1, kind: input, shape index: {}, may-alias: {0,1}]
  %s2 = inlined_call_operand.vmem [shape: bf16[144,16], index: 2, kind: input, shape index: {}]
  %s3 = inlined_call_operand.vmem [shape: f32[1,16], index: 3, kind: input, shape index: {}]
  %s4 = inlined_call_operand.vmem [shape: f32[1,32], index: 4, kind: input, shape index: {}]
  %s5 = inlined_call_operand.hbm [shape: f32[2,8,8,32], index: 5, kind: output, shape index: {}]
  %s6 = sld [smem:[#allocation0]]
  $region53: #{down_sampling_block_forward.1} parent=0
    _
  %s8 = ssub.s32 1, %s6
  %s9 = scalar_select 0, %s8, %s6
  $region1: #{down_sampling_block_forward.1} parent=0
    #allocation2 [shape = 'u8[65536]{0}', space=vmem, size = 0x10000, scoped, tag = 'output window, operand 0']
    #allocation3 [shape = 's32[2]{0}', space=sflag, size = 0x8, scoped, tag = 'scoped memory for down_sampling_block_forward.1']
    %10 = vsyncpa [#allocation3], 0
    %s11 = scalar_lea.sflag [#allocation3], 1
    %12 = vsyncpa %s11, 0
    loop: start=0, step=1, limit=4
    $region2: #{down_sampling_block_forward.1} parent=1 // loop_pre_header
      _
    $region3: #{down_sampling_block_forward.1} parent=1 // loop_header
      %s14 = sphi 0, %s18
      %p15 = scmp.ge.s32.totalorder %s14, 4
      %s21 = sphi 0, %s33
      %s22 = sphi 0, %s29
      %s23 = sphi 0, %s21
      %s24 = sphi 0, %s22
      %s25 = sphi 0, %s23
      %s26 = sphi 0, %s24
      %s38 = sphi 0, %s40
      %s41 = sphi 0, %s38
      %s42 = sphi 0, %s41
      %s58 = sphi 0, %s42
      %s74 = sphi 0, %s76
      %s77 = sphi 0, %s74
      %s78 = sphi 0, %s77
      %s94 = sphi 0, %s78
      %s98 = sphi 0, %s98
      %s100 = sphi 0, %s98
      %s101 = sphi 0, %s100
      %s115 = sphi 0, %s101
      %s119 = sphi 0, %s119
      %s121 = sphi 0, %s119
      %s122 = sphi 0, %s121
      %s136 = sphi 0, %s122
      %s140 = sphi 0, %s140
      %s142 = sphi 0, %s140
      %s143 = sphi 0, %s142
      %s157 = sphi 0, %s143
      %s165 = sphi 0, %s167
      %s168 = sphi 0, %s165
      %s169 = sphi 0, %s168
      %s185 = sphi 0, %s169
    $region4: #{down_sampling_block_forward.1} parent=1 // loop_header_branch
      %17 = sbr.rel (%p15) target = $region8
    $region5: #{down_sampling_block_forward.1} parent=1 // loop_body
      %s19 = ssub.s32 %s14, 1
      %s20 = ssub.s32 %s14, 2
      %s27 = sadd.s32 1, %s22
      %p28 = scmp.ge.s32.totalorder %s27, 1
      %s29 = scalar_select %p28, 0, %s27
      %s30 = sadd.s32 1, %s21
      %s31 = scalar_select %p28, %s30, %s21
      %p32 = scmp.ge.s32.totalorder %s31, 2
      %s33 = scalar_select %p32, 0, %s31
      %s34 = ssub.s32 %s21, %s33
      %s35 = ssub.s32 %s22, %s29
      %s36 = sor.u32 %s34, %s35
      %p37 = scmp.eq.s32.totalorder %s36, 0
      %s39 = sadd.s32 %s38, 1
      %s40 = scalar_select %p37, %s38, %s39
      %p43 = pneg %p37
      %p44 = scmp.eq.s32.totalorder %s14, 1
      %p45 = por %p43, %p44
      %p46 = scmp.ne.s32.totalorder %s38, %s41
      %p47 = scmp.eq.s32.totalorder %s14, 0
      %p48 = por %p46, %p47
      %p49 = scmp.ne.s32.totalorder %s38, %s41
      %p50 = scmp.eq.s32.totalorder %s19, 1
      %p51 = por %p49, %p50
      %p52 = scmp.ne.s32.totalorder %s41, %s42
      %p53 = scmp.eq.s32.totalorder %s19, 0
      %p54 = por %p52, %p53
      %p55 = scmp.ne.s32.totalorder %s41, %s42
      %p56 = scmp.eq.s32.totalorder %s20, 1
      %p57 = por %p55, %p56
      %p59 = scmp.ne.s32.totalorder %s42, %s58
      %p60 = scmp.eq.s32.totalorder %s20, 0
      %p61 = por %p59, %p60
      %s62 = smul.u32 %s22, 8
      %s63 = ssub.s32 %s62, 1
      %p64 = scmp.gt.s32.totalorder %s63, 0
      %s65 = scalar_select %p64, %s63, 0
      %s66 = smul.u32 %s29, 8
      %s67 = ssub.s32 %s66, 1
      %p68 = scmp.gt.s32.totalorder %s67, 0
      %s69 = scalar_select %p68, %s67, 0
      %s70 = ssub.s32 %s21, %s33
      %s71 = ssub.s32 %s65, %s69
      %s72 = sor.u32 %s70, %s71
      %p73 = scmp.eq.s32.totalorder %s72, 0
      %s75 = sadd.s32 %s74, 1
      %s76 = scalar_select %p73, %s74, %s75
      %p79 = pneg %p73
      %p80 = scmp.eq.s32.totalorder %s14, 1
      %p81 = por %p79, %p80
      %p82 = scmp.ne.s32.totalorder %s74, %s77
      %p83 = scmp.eq.s32.totalorder %s14, 0
      %p84 = por %p82, %p83
      %p85 = scmp.ne.s32.totalorder %s74, %s77
      %p86 = scmp.eq.s32.totalorder %s19, 1
      %p87 = por %p85, %p86
      %p88 = scmp.ne.s32.totalorder %s77, %s78
      %p89 = scmp.eq.s32.totalorder %s19, 0
      %p90 = por %p88, %p89
      %p91 = scmp.ne.s32.totalorder %s77, %s78
      %p92 = scmp.eq.s32.totalorder %s20, 1
      %p93 = por %p91, %p92
      %p95 = scmp.ne.s32.totalorder %s78, %s94
      %p96 = scmp.eq.s32.totalorder %s20, 0
      %p97 = por %p95, %p96
      %s99 = sadd.s32 %s98, 1
      %p102 = scmp.eq.s32.totalorder %s14, 1
      %p103 = scmp.ne.s32.totalorder %s98, %s100
      %p104 = scmp.eq.s32.totalorder %s14, 0
      %p105 = por %p103, %p104
      %p106 = scmp.ne.s32.totalorder %s98, %s100
      %p107 = scmp.eq.s32.totalorder %s19, 1
      %p108 = por %p106, %p107
      %p109 = scmp.ne.s32.totalorder %s100, %s101
      %p110 = scmp.eq.s32.totalorder %s19, 0
      %p111 = por %p109, %p110
      %p112 = scmp.ne.s32.totalorder %s100, %s101
      %p113 = scmp.eq.s32.totalorder %s20, 1
      %p114 = por %p112, %p113
      %p116 = scmp.ne.s32.totalorder %s101, %s115
      %p117 = scmp.eq.s32.totalorder %s20, 0
      %p118 = por %p116, %p117
      %s120 = sadd.s32 %s119, 1
      %p123 = scmp.eq.s32.totalorder %s14, 1
      %p124 = scmp.ne.s32.totalorder %s119, %s121
      %p125 = scmp.eq.s32.totalorder %s14, 0
      %p126 = por %p124, %p125
      %p127 = scmp.ne.s32.totalorder %s119, %s121
      %p128 = scmp.eq.s32.totalorder %s19, 1
      %p129 = por %p127, %p128
      %p130 = scmp.ne.s32.totalorder %s121, %s122
      %p131 = scmp.eq.s32.totalorder %s19, 0
      %p132 = por %p130, %p131
      %p133 = scmp.ne.s32.totalorder %s121, %s122
      %p134 = scmp.eq.s32.totalorder %s20, 1
      %p135 = por %p133, %p134
      %p137 = scmp.ne.s32.totalorder %s122, %s136
      %p138 = scmp.eq.s32.totalorder %s20, 0
      %p139 = por %p137, %p138
      %s141 = sadd.s32 %s140, 1
      %p144 = scmp.eq.s32.totalorder %s14, 1
      %p145 = scmp.ne.s32.totalorder %s140, %s142
      %p146 = scmp.eq.s32.totalorder %s14, 0
      %p147 = por %p145, %p146
      %p148 = scmp.ne.s32.totalorder %s140, %s142
      %p149 = scmp.eq.s32.totalorder %s19, 1
      %p150 = por %p148, %p149
      %p151 = scmp.ne.s32.totalorder %s142, %s143
      %p152 = scmp.eq.s32.totalorder %s19, 0
      %p153 = por %p151, %p152
      %p154 = scmp.ne.s32.totalorder %s142, %s143
      %p155 = scmp.eq.s32.totalorder %s20, 1
      %p156 = por %p154, %p155
      %p158 = scmp.ne.s32.totalorder %s143, %s157
      %p159 = scmp.eq.s32.totalorder %s20, 0
      %p160 = por %p158, %p159
      %s161 = ssub.s32 %s21, %s33
      %s162 = ssub.s32 %s22, %s29
      %s163 = sor.u32 %s161, %s162
      %p164 = scmp.eq.s32.totalorder %s163, 0
      %s166 = sadd.s32 %s165, 1
      %s167 = scalar_select %p164, %s165, %s166
      %p170 = pneg %p164
      %p171 = scmp.eq.s32.totalorder %s14, 1
      %p172 = por %p170, %p171
      %p173 = scmp.ne.s32.totalorder %s165, %s168
      %p174 = scmp.eq.s32.totalorder %s14, 0
      %p175 = por %p173, %p174
      %p176 = scmp.ne.s32.totalorder %s165, %s168
      %p177 = scmp.eq.s32.totalorder %s19, 1
      %p178 = por %p176, %p177
      %p179 = scmp.ne.s32.totalorder %s168, %s169
      %p180 = scmp.eq.s32.totalorder %s19, 0
      %p181 = por %p179, %p180
      %p182 = scmp.ne.s32.totalorder %s168, %s169
      %p183 = scmp.eq.s32.totalorder %s20, 1
      %p184 = por %p182, %p183
      %p186 = scmp.ne.s32.totalorder %s169, %s185
      %p187 = scmp.eq.s32.totalorder %s20, 0
      %p188 = por %p186, %p187
      %p189 = scmp.le.s32.totalorder 1, %s14
      %p190 = scmp.lt.s32.totalorder %s14, 3
      %p191 = pnand %p189, %p190
      %p192 = pneg %p191
      // Predicated region
      $region9: #{down_sampling_block_forward.1} parent=5 // pred_check
        _
      $region10: #{down_sampling_block_forward.1} parent=5 // pred_check_branch
        %194 = sbr.rel (%p191) target = $region12
      $region11: #{down_sampling_block_forward.1} parent=5 // pred_region
        %s195 = ssub.s32 %s14, 1
        // Predicated region
        $region13: #{down_sampling_block_forward.1} parent=11 // pred_check
          %p196 = pneg %p111
        $region14: #{down_sampling_block_forward.1} parent=11 // pred_check_branch
          %198 = sbr.rel (%p196) target = $region16
        $region15: #{down_sampling_block_forward.1} parent=11 // pred_region
          _
        $region16: #{down_sampling_block_forward.1} parent=11 // pred_fallthru
          _
        // Predicated region
        $region17: #{down_sampling_block_forward.1} parent=11 // pred_check
          %p199 = pneg %p132
        $region18: #{down_sampling_block_forward.1} parent=11 // pred_check_branch
          %201 = sbr.rel (%p199) target = $region20
        $region19: #{down_sampling_block_forward.1} parent=11 // pred_region
          _
        $region20: #{down_sampling_block_forward.1} parent=11 // pred_fallthru
          _
        // Predicated region
        $region21: #{down_sampling_block_forward.1} parent=11 // pred_check
          %p202 = pneg %p153
        $region22: #{down_sampling_block_forward.1} parent=11 // pred_check_branch
          %204 = sbr.rel (%p202) target = $region24
        $region23: #{down_sampling_block_forward.1} parent=11 // pred_region
          _
        $region24: #{down_sampling_block_forward.1} parent=11 // pred_fallthru
          _
      $region12: #{down_sampling_block_forward.1} parent=5 // pred_fallthru
        _
      %p205 = scmp.lt.s32.totalorder %s14, 2
      // Predicated region
      $region25: #{down_sampling_block_forward.1} parent=5 // pred_check
        %p206 = pneg %p205
      $region26: #{down_sampling_block_forward.1} parent=5 // pred_check_branch
        %208 = sbr.rel (%p206) target = $region28
      $region27: #{down_sampling_block_forward.1} parent=5 // pred_region
        // Predicated region
        $region29: #{down_sampling_block_forward.1} parent=27 // pred_check
          %p209 = pneg %p48
        $region30: #{down_sampling_block_forward.1} parent=27 // pred_check_branch
          %211 = sbr.rel (%p209) target = $region32
        $region31: #{down_sampling_block_forward.1} parent=27 // pred_region
          %s212 = smul.u32 8, %s22
          %p213 = scmp.lt.s32.totalorder %s21, 1
          %s214 = scalar_select %p213, %s21, 1
          %p215 = scmp.lt.s32.totalorder %s212, 7
          %s216 = scalar_select %p215, %s212, 7
          %s217 = smul.addr %s216, 2
          %s218 = smul.addr %s214, 16
          %s219 = sadd.s32 %s217, %s218
          %s220 = smul.addr %s219, 8
          %s221 = scalar_lea.vmem %s0, %s220
          %s222 = smul.u32 8, %s22
        $region32: #{down_sampling_block_forward.1} parent=27 // pred_fallthru
          _
        // Predicated region
        $region33: #{down_sampling_block_forward.1} parent=27 // pred_check
          %p223 = pneg %p84
        $region34: #{down_sampling_block_forward.1} parent=27 // pred_check_branch
          %225 = sbr.rel (%p223) target = $region36
        $region35: #{down_sampling_block_forward.1} parent=27 // pred_region
          %s226 = smul.u32 %s22, 8
          %s227 = ssub.s32 %s226, 1
          %p228 = scmp.gt.s32.totalorder %s227, 0
          %s229 = scalar_select %p228, %s227, 0
          %p230 = scmp.lt.s32.totalorder %s21, 1
          %s231 = scalar_select %p230, %s21, 1
          %p232 = scmp.lt.s32.totalorder %s229, 7
          %s233 = scalar_select %p232, %s229, 7
          %s234 = smul.addr %s233, 2
          %s235 = sadd.s32 1, %s234
          %s236 = smul.addr %s231, 16
          %s237 = sadd.s32 %s235, %s236
          %s238 = smul.addr %s237, 8
          %s239 = scalar_lea.vmem %s1, %s238
          %s240 = smul.u32 %s22, 8
          %s241 = ssub.s32 %s240, 1
          %p242 = scmp.gt.s32.totalorder %s241, 0
          %s243 = scalar_select %p242, %s241, 0
        $region36: #{down_sampling_block_forward.1} parent=27 // pred_fallthru
          _
      $region28: #{down_sampling_block_forward.1} parent=5 // pred_fallthru
        _
      %p244 = scmp.le.s32.totalorder 1, %s14
      %p245 = scmp.lt.s32.totalorder %s14, 3
      %p246 = pnand %p244, %p245
      %p247 = pneg %p246
      // Predicated region
      $region37: #{down_sampling_block_forward.1} parent=5 // pred_check
        _
      $region38: #{down_sampling_block_forward.1} parent=5 // pred_check_branch
        %249 = sbr.rel (%p246) target = $region40
      $region39: #{down_sampling_block_forward.1} parent=5 // pred_region
        %s250 = ssub.s32 %s14, 1
        %s251 = smul.u32 8, %s24
        %p252 = scmp.lt.s32.totalorder %s23, 1
        %s253 = scalar_select %p252, %s23, 1
        %p254 = scmp.lt.s32.totalorder %s251, 7
        %s255 = scalar_select %p254, %s251, 7
        %s256 = smul.addr %s255, 2
        %s257 = smul.addr %s253, 16
        %s258 = sadd.s32 %s256, %s257
        %s259 = smul.addr %s258, 8
        %s260 = scalar_lea.vmem %s0, %s259
        %p261 = pneg %p54
        %p262 = pneg %p51
        %s263 = smul.u32 %s24, 8
        %s264 = ssub.s32 %s263, 1
        %p265 = scmp.gt.s32.totalorder %s264, 0
        %s266 = scalar_select %p265, %s264, 0
        %p267 = scmp.lt.s32.totalorder %s23, 1
        %s268 = scalar_select %p267, %s23, 1
        %p269 = scmp.lt.s32.totalorder %s266, 7
        %s270 = scalar_select %p269, %s266, 7
        %s271 = smul.addr %s270, 2
        %s272 = sadd.s32 1, %s271
        %s273 = smul.addr %s268, 16
        %s274 = sadd.s32 %s272, %s273
        %s275 = smul.addr %s274, 8
        %s276 = scalar_lea.vmem %s1, %s275
        %p277 = pneg %p90
        %p278 = pneg %p87
        %p279 = pneg %p111
        %p280 = pneg %p108
        %p281 = pneg %p132
        %p282 = pneg %p129
        %p283 = pneg %p153
        %p284 = pneg %p150
        %p285 = pneg %p181
        %p286 = pneg %p178
        %s287 = sand.u32 %s168, 1
        %s288 = scalar_lea.sflag [#allocation3], %s287
        %s289 = sand.u32 %s168, 1
        %s290 = smul.addr %s289, 64
        %s291 = scalar_lea.vmem [#allocation2], %s290
        %s292 = smul.u32 8, %s24
        %p293 = scmp.lt.s32.totalorder %s23, 1
        %s294 = scalar_select %p293, %s23, 1
        %p295 = scmp.lt.s32.totalorder %s292, 7
        %s296 = scalar_select %p295, %s292, 7
        %s297 = smul.addr %s296, 2
        %s298 = smul.addr %s294, 16
        %s299 = sadd.s32 %s297, %s298
        %s300 = smul.addr %s299, 8
        %s301 = scalar_lea.vmem %s0, %s300
        %s302 = smul.u32 8, %s24
        %s303 = smul.u32 %s24, 8
        %s304 = ssub.s32 %s303, 1
        %p305 = scmp.gt.s32.totalorder %s304, 0
        %s306 = scalar_select %p305, %s304, 0
        %p307 = scmp.lt.s32.totalorder %s23, 1
        %s308 = scalar_select %p307, %s23, 1
        %p309 = scmp.lt.s32.totalorder %s306, 7
        %s310 = scalar_select %p309, %s306, 7
        %s311 = smul.addr %s310, 2
        %s312 = sadd.s32 1, %s311
        %s313 = smul.addr %s308, 16
        %s314 = sadd.s32 %s312, %s313
        %s315 = smul.addr %s314, 8
        %s316 = scalar_lea.vmem %s1, %s315
        %s317 = smul.u32 %s24, 8
        %s318 = ssub.s32 %s317, 1
        %p319 = scmp.gt.s32.totalorder %s318, 0
        %s320 = scalar_select %p319, %s318, 0
        %s321 = smul.u32 8, %s24
        %v323 = vld [vmem:[%s301] sm:$0xff]
        %v324 = vld [vmem:[%s301 + $0x10] sm:$0xff]
        %v325 = vld [vmem:[%s301 + $0x20] sm:$0xff]
        %v326 = vld [vmem:[%s301 + $0x30] sm:$0xff]
        %v327 = vld [vmem:[%s301 + $0x40] sm:$0xff]
        %v328 = vld [vmem:[%s301 + $0x50] sm:$0xff]
        %v329 = vld [vmem:[%s301 + $0x60] sm:$0xff]
        %v330 = vld [vmem:[%s301 + $0x70] sm:$0xff]
        %s331 = scalar_lea.vmem %s301, 8
        %v332 = vld [vmem:[%s331] sm:$0xff]
        %v333 = vld [vmem:[%s331 + $0x10] sm:$0xff]
        %v334 = vld [vmem:[%s331 + $0x20] sm:$0xff]
        %v335 = vld [vmem:[%s331 + $0x30] sm:$0xff]
        %v336 = vld [vmem:[%s331 + $0x40] sm:$0xff]
        %v337 = vld [vmem:[%s331 + $0x50] sm:$0xff]
        %v338 = vld [vmem:[%s331 + $0x60] sm:$0xff]
        %v339 = vld [vmem:[%s331 + $0x70] sm:$0xff]
        %v340 = vld [vmem:[%s316] sm:$0xff]
        %349 = vrot.lane.b32.xlu0 %v323, 112
        %v350 = vpop.permute.xlu0 %349
        %351 = vrot.lane.b32.xlu0 %v324, 112
        %v352 = vpop.permute.xlu0 %351
        %353 = vrot.lane.b32.xlu0 %v325, 112
        %v354 = vpop.permute.xlu0 %353
        %355 = vrot.lane.b32.xlu0 %v326, 112
        %v356 = vpop.permute.xlu0 %355
        %357 = vrot.lane.b32.xlu0 %v327, 112
        %v358 = vpop.permute.xlu0 %357
        %359 = vrot.lane.b32.xlu0 %v328, 112
        %v360 = vpop.permute.xlu0 %359
        %361 = vrot.lane.b32.xlu0 %v329, 112
        %v362 = vpop.permute.xlu0 %361
        %363 = vrot.lane.b32.xlu0 %v330, 112
        %v364 = vpop.permute.xlu0 %363
        %v373 = vmax.f32 %v323, %v350
        %v374 = vmax.f32 %v324, %v352
        %v375 = vmax.f32 %v325, %v354
        %v376 = vmax.f32 %v326, %v356
        %v377 = vmax.f32 %v327, %v358
        %v378 = vmax.f32 %v328, %v360
        %v379 = vmax.f32 %v329, %v362
        %v380 = vmax.f32 %v330, %v364
        %389 = vrot.lane.b32.xlu0 %v332, 112
        %v390 = vpop.permute.xlu0 %389
        %391 = vrot.lane.b32.xlu0 %v333, 112
        %v392 = vpop.permute.xlu0 %391
        %393 = vrot.lane.b32.xlu0 %v334, 112
        %v394 = vpop.permute.xlu0 %393
        %395 = vrot.lane.b32.xlu0 %v335, 112
        %v396 = vpop.permute.xlu0 %395
        %397 = vrot.lane.b32.xlu0 %v336, 112
        %v398 = vpop.permute.xlu0 %397
        %399 = vrot.lane.b32.xlu0 %v337, 112
        %v400 = vpop.permute.xlu0 %399
        %401 = vrot.lane.b32.xlu0 %v338, 112
        %v402 = vpop.permute.xlu0 %401
        %403 = vrot.lane.b32.xlu0 %v339, 112
        %v404 = vpop.permute.xlu0 %403
        %v413 = vmax.f32 %v332, %v390
        %v414 = vmax.f32 %v333, %v392
        %v415 = vmax.f32 %v334, %v394
        %v416 = vmax.f32 %v335, %v396
        %v417 = vmax.f32 %v336, %v398
        %v418 = vmax.f32 %v337, %v400
        %v419 = vmax.f32 %v338, %v402
        %v420 = vmax.f32 %v339, %v404
        %v421 = vmax.f32 %v373, %v413
        %v422 = vmax.f32 %v374, %v414
        %v423 = vmax.f32 %v375, %v415
        %v424 = vmax.f32 %v376, %v416
        %v425 = vmax.f32 %v377, %v417
        %v426 = vmax.f32 %v378, %v418
        %v427 = vmax.f32 %v379, %v419
        %v428 = vmax.f32 %v380, %v420
        %v429 = vld [vmem:[%s3] sm:$0x1]
        %v431 = vlaneseq
        %v432 = vshrl.u32 %v431, 7
        %v433 = vsub.s32 0, %v432
        %v434 = vrot.slane %v429, %v433
        %v436 = vmul.f32 %v421, %v434
        %v437 = vmul.f32 %v422, %v434
        %v438 = vmul.f32 %v423, %v434
        %v439 = vmul.f32 %v424, %v434
        %v440 = vmul.f32 %v425, %v434
        %v441 = vmul.f32 %v426, %v434
        %v442 = vmul.f32 %v427, %v434
        %v443 = vmul.f32 %v428, %v434
        %v444 = vpack.c.bf16 %v323, %v323
        %v445 = vpack.c.bf16 %v324, %v324
        %v446 = vpack.c.bf16 %v325, %v325
        %v447 = vpack.c.bf16 %v326, %v326
        %v448 = vpack.c.bf16 %v327, %v327
        %v449 = vpack.c.bf16 %v328, %v328
        %v450 = vpack.c.bf16 %v329, %v329
        %v451 = vpack.c.bf16 %v330, %v330
        %v452 = vpack.c.bf16 %v332, %v332
        %v453 = vpack.c.bf16 %v333, %v333
        %v454 = vpack.c.bf16 %v334, %v334
        %v455 = vpack.c.bf16 %v335, %v335
        %v456 = vpack.c.bf16 %v336, %v336
        %v457 = vpack.c.bf16 %v337, %v337
        %v458 = vpack.c.bf16 %v338, %v338
        %v459 = vpack.c.bf16 %v339, %v339
        %p460 = scmp.gt.s32.totalorder %s24, 0
        %s461 = scalar_select %p460, 1, 0
        %s462 = scvt.s32.f32 %s461
        %v463 = vstv %s462
        %v464 = vmul.f32 %v340, %v463
        %v465 = vpack.c.bf16 %v464, %v464
        %v467 = vshrl.u32 %v465, 16
        %v469 = vrot.slane %v467, 7
        %v470 = vshll.u32 %v465, 16
        %v472 = vor.u32 %v469, %v470
        %v474 = vshrl.u32 %v452, 16
        %v476 = vrot.slane %v474, 7
        %v477 = vshll.u32 %v452, 16
        %v479 = vor.u32 %v476, %v477
        %v481 = vshrl.u32 %v453, 16
        %v483 = vrot.slane %v481, 7
        %v484 = vshll.u32 %v453, 16
        %v486 = vor.u32 %v483, %v484
        %v488 = vshrl.u32 %v454, 16
        %v490 = vrot.slane %v488, 7
        %v491 = vshll.u32 %v454, 16
        %v493 = vor.u32 %v490, %v491
        %v495 = vshrl.u32 %v455, 16
        %v497 = vrot.slane %v495, 7
        %v498 = vshll.u32 %v455, 16
        %v500 = vor.u32 %v497, %v498
        %v502 = vshrl.u32 %v456, 16
        %v504 = vrot.slane %v502, 7
        %v505 = vshll.u32 %v456, 16
        %v507 = vor.u32 %v504, %v505
        %v509 = vshrl.u32 %v457, 16
        %v511 = vrot.slane %v509, 7
        %v512 = vshll.u32 %v457, 16
        %v514 = vor.u32 %v511, %v512
        %v516 = vshrl.u32 %v458, 16
        %v518 = vrot.slane %v516, 7
        %v519 = vshll.u32 %v458, 16
        %v521 = vor.u32 %v518, %v519
        %522 = vrot.lane.b32.xlu0 %v472, 112
        %v523 = vpop.permute.xlu0 %522
        %524 = vrot.lane.b32.xlu0 %v479, 112
        %v525 = vpop.permute.xlu0 %524
        %526 = vrot.lane.b32.xlu0 %v486, 112
        %v527 = vpop.permute.xlu0 %526
        %528 = vrot.lane.b32.xlu0 %v493, 112
        %v529 = vpop.permute.xlu0 %528
        %530 = vrot.lane.b32.xlu0 %v500, 112
        %v531 = vpop.permute.xlu0 %530
        %532 = vrot.lane.b32.xlu0 %v507, 112
        %v533 = vpop.permute.xlu0 %532
        %534 = vrot.lane.b32.xlu0 %v514, 112
        %v535 = vpop.permute.xlu0 %534
        %536 = vrot.lane.b32.xlu0 %v521, 112
        %v537 = vpop.permute.xlu0 %536
        %vm546 = vcmask 1040384
        %vm547 = vsmask.f32 256
        %vm548 = vmand %vm546, %vm547
        %v549 = vsel %vm548, 0, %v523
        %v550 = vsel %vm548, 0, %v525
        %v551 = vsel %vm548, 0, %v527
        %v552 = vsel %vm548, 0, %v529
        %v553 = vsel %vm548, 0, %v531
        %v554 = vsel %vm548, 0, %v533
        %v555 = vsel %vm548, 0, %v535
        %v556 = vsel %vm548, 0, %v537
        %v558 = vshrl.u32 %v444, 16
        %v560 = vrot.slane %v558, 7
        %v561 = vshll.u32 %v444, 16
        %v563 = vor.u32 %v560, %v561
        %v565 = vshrl.u32 %v445, 16
        %v567 = vrot.slane %v565, 7
        %v568 = vshll.u32 %v445, 16
        %v570 = vor.u32 %v567, %v568
        %v572 = vshrl.u32 %v446, 16
        %v574 = vrot.slane %v572, 7
        %v575 = vshll.u32 %v446, 16
        %v577 = vor.u32 %v574, %v575
        %v579 = vshrl.u32 %v447, 16
        %v581 = vrot.slane %v579, 7
        %v582 = vshll.u32 %v447, 16
        %v584 = vor.u32 %v581, %v582
        %v586 = vshrl.u32 %v448, 16
        %v588 = vrot.slane %v586, 7
        %v589 = vshll.u32 %v448, 16
        %v591 = vor.u32 %v588, %v589
        %v593 = vshrl.u32 %v449, 16
        %v595 = vrot.slane %v593, 7
        %v596 = vshll.u32 %v449, 16
        %v598 = vor.u32 %v595, %v596
        %v600 = vshrl.u32 %v450, 16
        %v602 = vrot.slane %v600, 7
        %v603 = vshll.u32 %v450, 16
        %v605 = vor.u32 %v602, %v603
        %v607 = vshrl.u32 %v451, 16
        %v609 = vrot.slane %v607, 7
        %v610 = vshll.u32 %v451, 16
        %v612 = vor.u32 %v609, %v610
        %613 = vrot.lane.b32.xlu0 %v563, 112
        %v614 = vpop.permute.xlu0 %613
        %615 = vrot.lane.b32.xlu0 %v570, 112
        %v616 = vpop.permute.xlu0 %615
        %617 = vrot.lane.b32.xlu0 %v577, 112
        %v618 = vpop.permute.xlu0 %617
        %619 = vrot.lane.b32.xlu0 %v584, 112
        %v620 = vpop.permute.xlu0 %619
        %621 = vrot.lane.b32.xlu0 %v591, 112
        %v622 = vpop.permute.xlu0 %621
        %623 = vrot.lane.b32.xlu0 %v598, 112
        %v624 = vpop.permute.xlu0 %623
        %625 = vrot.lane.b32.xlu0 %v605, 112
        %v626 = vpop.permute.xlu0 %625
        %627 = vrot.lane.b32.xlu0 %v612, 112
        %v628 = vpop.permute.xlu0 %627
        %v637 = vsel %vm548, 0, %v614
        %v638 = vsel %vm548, 0, %v616
        %v639 = vsel %vm548, 0, %v618
        %v640 = vsel %vm548, 0, %v620
        %v641 = vsel %vm548, 0, %v622
        %v642 = vsel %vm548, 0, %v624
        %v643 = vsel %vm548, 0, %v626
        %v644 = vsel %vm548, 0, %v628
        %v646 = vshrl.u32 %v459, 16
        %v648 = vrot.slane %v646, 7
        %v649 = vshll.u32 %v459, 16
        %v651 = vor.u32 %v648, %v649
        %652 = vrot.lane.b32.xlu0 %v651, 112
        %v653 = vpop.permute.xlu0 %652
        %v655 = vsel %vm548, 0, %v653
        %664 = vrot.lane.b32.xlu0 %v465, 16
        %v665 = vpop.permute.xlu0 %664
        %666 = vrot.lane.b32.xlu0 %v452, 16
        %v667 = vpop.permute.xlu0 %666
        %668 = vrot.lane.b32.xlu0 %v453, 16
        %v669 = vpop.permute.xlu0 %668
        %670 = vrot.lane.b32.xlu0 %v454, 16
        %v671 = vpop.permute.xlu0 %670
        %672 = vrot.lane.b32.xlu0 %v455, 16
        %v673 = vpop.permute.xlu0 %672
        %674 = vrot.lane.b32.xlu0 %v456, 16
        %v675 = vpop.permute.xlu0 %674
        %676 = vrot.lane.b32.xlu0 %v457, 16
        %v677 = vpop.permute.xlu0 %676
        %678 = vrot.lane.b32.xlu0 %v458, 16
        %v679 = vpop.permute.xlu0 %678
        %688 = vrot.lane.b32.xlu0 %v637, 48
        %v689 = vpop.permute.xlu0 %688
        %690 = vrot.lane.b32.xlu0 %v638, 48
        %v691 = vpop.permute.xlu0 %690
        %692 = vrot.lane.b32.xlu0 %v639, 48
        %v693 = vpop.permute.xlu0 %692
        %694 = vrot.lane.b32.xlu0 %v640, 48
        %v695 = vpop.permute.xlu0 %694
        %696 = vrot.lane.b32.xlu0 %v641, 48
        %v697 = vpop.permute.xlu0 %696
        %698 = vrot.lane.b32.xlu0 %v642, 48
        %v699 = vpop.permute.xlu0 %698
        %700 = vrot.lane.b32.xlu0 %v643, 48
        %v701 = vpop.permute.xlu0 %700
        %702 = vrot.lane.b32.xlu0 %v644, 48
        %v703 = vpop.permute.xlu0 %702
        %712 = vrot.lane.b32.xlu0 %v444, 64
        %v713 = vpop.permute.xlu0 %712
        %714 = vrot.lane.b32.xlu0 %v445, 64
        %v715 = vpop.permute.xlu0 %714
        %716 = vrot.lane.b32.xlu0 %v446, 64
        %v717 = vpop.permute.xlu0 %716
        %718 = vrot.lane.b32.xlu0 %v447, 64
        %v719 = vpop.permute.xlu0 %718
        %720 = vrot.lane.b32.xlu0 %v448, 64
        %v721 = vpop.permute.xlu0 %720
        %722 = vrot.lane.b32.xlu0 %v449, 64
        %v723 = vpop.permute.xlu0 %722
        %724 = vrot.lane.b32.xlu0 %v450, 64
        %v725 = vpop.permute.xlu0 %724
        %726 = vrot.lane.b32.xlu0 %v451, 64
        %v727 = vpop.permute.xlu0 %726
        %736 = vrot.lane.b32.xlu0 %v550, 96
        %v737 = vpop.permute.xlu0 %736
        %738 = vrot.lane.b32.xlu0 %v551, 96
        %v739 = vpop.permute.xlu0 %738
        %740 = vrot.lane.b32.xlu0 %v552, 96
        %v741 = vpop.permute.xlu0 %740
        %742 = vrot.lane.b32.xlu0 %v553, 96
        %v743 = vpop.permute.xlu0 %742
        %744 = vrot.lane.b32.xlu0 %v554, 96
        %v745 = vpop.permute.xlu0 %744
        %746 = vrot.lane.b32.xlu0 %v555, 96
        %v747 = vpop.permute.xlu0 %746
        %748 = vrot.lane.b32.xlu0 %v556, 96
        %v749 = vpop.permute.xlu0 %748
        %750 = vrot.lane.b32.xlu0 %v655, 96
        %v751 = vpop.permute.xlu0 %750
        %753 = vrot.lane.b32.xlu0 %v452, 112
        %v754 = vpop.permute.xlu0 %753
        %755 = vrot.lane.b32.xlu0 %v453, 112
        %v756 = vpop.permute.xlu0 %755
        %757 = vrot.lane.b32.xlu0 %v454, 112
        %v758 = vpop.permute.xlu0 %757
        %759 = vrot.lane.b32.xlu0 %v455, 112
        %v760 = vpop.permute.xlu0 %759
        %761 = vrot.lane.b32.xlu0 %v456, 112
        %v762 = vpop.permute.xlu0 %761
        %763 = vrot.lane.b32.xlu0 %v457, 112
        %v764 = vpop.permute.xlu0 %763
        %765 = vrot.lane.b32.xlu0 %v458, 112
        %v766 = vpop.permute.xlu0 %765
        %767 = vrot.lane.b32.xlu0 %v459, 112
        %v768 = vpop.permute.xlu0 %767
        %vm769 = vcmask 130048
        %v772 = vsel %vm769, %v549, %v665
        %v775 = vsel %vm769, %v550, %v667
        %v778 = vsel %vm769, %v551, %v669
        %v781 = vsel %vm769, %v552, %v671
        %v784 = vsel %vm769, %v553, %v673
        %v787 = vsel %vm769, %v554, %v675
        %v790 = vsel %vm769, %v555, %v677
        %v793 = vsel %vm769, %v556, %v679
        %vm794 = vcmask 392192
        %v796 = vsel %vm794, %v772, %v689
        %v798 = vsel %vm794, %v775, %v691
        %v800 = vsel %vm794, %v778, %v693
        %v802 = vsel %vm794, %v781, %v695
        %v804 = vsel %vm794, %v784, %v697
        %v806 = vsel %vm794, %v787, %v699
        %v808 = vsel %vm794, %v790, %v701
        %v810 = vsel %vm794, %v793, %v703
        %vm811 = vcmask 523264
        %v813 = vsel %vm811, %v796, %v713
        %v815 = vsel %vm811, %v798, %v715
        %v817 = vsel %vm811, %v800, %v717
        %v819 = vsel %vm811, %v802, %v719
        %v821 = vsel %vm811, %v804, %v721
        %v823 = vsel %vm811, %v806, %v723
        %v825 = vsel %vm811, %v808, %v725
        %v827 = vsel %vm811, %v810, %v727
        %vm828 = vcmask 785408
        %v830 = vsel %vm828, %v813, %v737
        %v832 = vsel %vm828, %v815, %v739
        %v834 = vsel %vm828, %v817, %v741
        %v836 = vsel %vm828, %v819, %v743
        %v838 = vsel %vm828, %v821, %v745
        %v840 = vsel %vm828, %v823, %v747
        %v842 = vsel %vm828, %v825, %v749
        %v844 = vsel %vm828, %v827, %v751
        %vm845 = vcmask 916480
        %v847 = vsel %vm845, %v830, %v754
        %v849 = vsel %vm845, %v832, %v756
        %v851 = vsel %vm845, %v834, %v758
        %v853 = vsel %vm845, %v836, %v760
        %v855 = vsel %vm845, %v838, %v762
        %v857 = vsel %vm845, %v840, %v764
        %v859 = vsel %vm845, %v842, %v766
        %v861 = vsel %vm845, %v844, %v768
        %v870 = vunpack.c.l.b16 %v847
        %v871 = vunpack.c.l.b16 %v754
        %v872 = vunpack.c.l.b16 %v849
        %v873 = vunpack.c.l.b16 %v756
        %v874 = vunpack.c.l.b16 %v851
        %v875 = vunpack.c.l.b16 %v758
        %v876 = vunpack.c.l.b16 %v853
        %v877 = vunpack.c.l.b16 %v760
        %v878 = vunpack.c.l.b16 %v855
        %v879 = vunpack.c.l.b16 %v762
        %v880 = vunpack.c.l.b16 %v857
        %v881 = vunpack.c.l.b16 %v764
        %v882 = vunpack.c.l.b16 %v859
        %v883 = vunpack.c.l.b16 %v766
        %v884 = vunpack.c.l.b16 %v861
        %v885 = vunpack.c.l.b16 %v768
        %v886 = vld [vmem:[%s2] sm:$0xf]
        %v887 = vld [vmem:[%s2 + $0x4] sm:$0xf]
        %v888 = vld [vmem:[%s2 + $0x8] sm:$0xf]
        %v889 = vld [vmem:[%s2 + $0xc] sm:$0xf]
        %v890 = vld [vmem:[%s2 + $0x10] sm:$0xf]
        %v891 = vld [vmem:[%s2 + $0x14] sm:$0xf]
        %v892 = vld [vmem:[%s2 + $0x18] sm:$0xf]
        %v893 = vld [vmem:[%s2 + $0x1c] sm:$0xf]
        %v894 = vld [vmem:[%s2 + $0x20] sm:$0xf]
        %v895 = vld [vmem:[%s2 + $0x24] sm:$0xf]
        %v896 = vld [vmem:[%s2 + $0x28] sm:$0xf]
        %v897 = vld [vmem:[%s2 + $0x2c] sm:$0xf]
        %v898 = vld [vmem:[%s2 + $0x30] sm:$0xf]
        %v899 = vld [vmem:[%s2 + $0x34] sm:$0xf]
        %v900 = vld [vmem:[%s2 + $0x38] sm:$0xf]
        %v901 = vld [vmem:[%s2 + $0x3c] sm:$0xf]
        %v902 = vld [vmem:[%s2 + $0x40] sm:$0xf]
        %v903 = vld [vmem:[%s2 + $0x44] sm:$0xf]
        %v904 = vpack.c.b16 %v872, %v870
        %v905 = vpack.c.b16 %v873, %v871
        %v906 = vpack.c.b16 %v876, %v874
        %v907 = vpack.c.b16 %v877, %v875
        %v908 = vpack.c.b16 %v880, %v878
        %v909 = vpack.c.b16 %v881, %v879
        %v910 = vpack.c.b16 %v884, %v882
        %v911 = vpack.c.b16 %v885, %v883
        %v934 = vunpack.c.l.b16 %v886
        %v935 = vunpack.c.l.b16 %v887
        %v936 = vunpack.c.l.b16 %v888
        %v937 = vunpack.c.l.b16 %v889
        %v938 = vunpack.c.l.b16 %v890
        %v939 = vunpack.c.l.b16 %v891
        %v940 = vunpack.c.l.b16 %v892
        %v941 = vunpack.c.l.b16 %v893
        %v942 = vunpack.c.l.b16 %v894
        %v943 = vunpack.c.l.b16 %v895
        %v944 = vunpack.c.l.b16 %v896
        %v945 = vunpack.c.l.b16 %v897
        %v946 = vunpack.c.l.b16 %v898
        %v947 = vunpack.c.l.b16 %v899
        %v948 = vunpack.c.l.b16 %v900
        %v949 = vunpack.c.l.b16 %v901
        %v950 = vunpack.c.l.b16 %v902
        %v951 = vunpack.c.l.b16 %v903
        %v952 = vpack.c.b16 %v935, %v934
        %v953 = vpack.c.b16 %v937, %v936
        %v954 = vpack.c.b16 %v939, %v938
        %v955 = vpack.c.b16 %v941, %v940
        %v956 = vpack.c.b16 %v943, %v942
        %v957 = vpack.c.b16 %v945, %v944
        %v958 = vpack.c.b16 %v947, %v946
        %v959 = vpack.c.b16 %v949, %v948
        %v960 = vpack.c.b16 %v951, %v950
        %v971 = vsel %vm769, %v905, 0
        %v974 = vsel %vm769, %v907, 0
        %v977 = vsel %vm769, %v909, 0
        %v980 = vsel %vm769, %v911, 0
        %982 = vmatprep.subr.bf16.mxu0 0
        %983 = vmatpush1.bf16.msra.mxu0 %v952
        %984 = vmatprep.subr.bf16.mxu0 0
        %985 = vmatpush1.bf16.msra.mxu0 %v953
        %986 = vmatprep.subr.bf16.mxu0 0
        %987 = vmatpush1.bf16.msra.mxu0 %v954
        %988 = vmatprep.subr.bf16.mxu0 0
        %989 = vmatpush1.bf16.msra.mxu0 %v955
        %990 = vmatprep.subr.bf16.mxu0 0
        %991 = vmatpush1.bf16.msra.mxu0 %v956
        %992 = vmatprep.subr.bf16.mxu0 0
        %993 = vmatpush1.bf16.msra.mxu0 %v957
        %994 = vmatprep.subr.bf16.mxu0 0
        %995 = vmatpush1.bf16.msra.mxu0 %v958
        %996 = vmatprep.subr.bf16.mxu0 0
        %997 = vmatpush1.bf16.msra.mxu0 %v959
        %998 = vmatprep.subr.bf16.mxu0 0
        %999 = vmatpush1.bf16.msra.mxu0 %v960
        %1000 = vmatprep.subr.bf16.mxu0 0
        %1001 = vmatpush1.bf16.msra.mxu0 0
        %1002 = vmatprep.subr.bf16.mxu0 0
        %1003 = vmatpush1.bf16.msra.mxu0 0
        %1004 = vmatprep.subr.bf16.mxu0 0
        %1005 = vmatpush1.bf16.msra.mxu0 0
        %1006 = vmatprep.subr.bf16.mxu0 0
        %1007 = vmatpush1.bf16.msra.mxu0 0
        %1008 = vmatprep.subr.bf16.mxu0 0
        %1009 = vmatpush1.bf16.msra.mxu0 0
        %1010 = vmatprep.subr.bf16.mxu0 0
        %1011 = vmatpush1.bf16.msra.mxu0 0
        %1012 = vmatprep.subr.bf16.mxu0 0
        %1013 = vmatpush1.bf16.msra.mxu0 0
        %1014 = vmatprep.mubr.bf16.mxu0 %v971
        %1015 = vmatmul.mubr.bf16.gmra.mrb[0].mxu0 %v904
        %v1016 = vpop.f32.mrb[0].mxu0
        %v1017 = vadd.f32 0.0, %v1016
        %v1018 = vpop.f32.mrb[0].mxu0
        %v1019 = vpop.f32.mrb[0].mxu0
        %v1020 = vadd.f32 0.0, %v1019
        %v1021 = vpop.f32.mrb[0].mxu0
        %1022 = vmatprep.mubr.bf16.mxu0 %v974
        %1023 = vmatmul.mubr.bf16.gmra.mrb[0].mxu0 %v906
        %v1024 = vpop.f32.mrb[0].mxu0
        %v1025 = vadd.f32 0.0, %v1024
        %v1026 = vpop.f32.mrb[0].mxu0
        %v1027 = vpop.f32.mrb[0].mxu0
        %v1028 = vadd.f32 0.0, %v1027
        %v1029 = vpop.f32.mrb[0].mxu0
        %1030 = vmatprep.mubr.bf16.mxu0 %v977
        %1031 = vmatmul.mubr.bf16.gmra.mrb[0].mxu0 %v908
        %v1032 = vpop.f32.mrb[0].mxu0
        %v1033 = vadd.f32 0.0, %v1032
        %v1034 = vpop.f32.mrb[0].mxu0
        %v1035 = vpop.f32.mrb[0].mxu0
        %v1036 = vadd.f32 0.0, %v1035
        %v1037 = vpop.f32.mrb[0].mxu0
        %1038 = vmatprep.mubr.bf16.mxu0 %v980
        %1039 = vmatmul.mubr.bf16.gmra.mrb[0].mxu0 %v910
        %v1040 = vpop.f32.mrb[0].mxu0
        %v1041 = vadd.f32 0.0, %v1040
        %v1042 = vpop.f32.mrb[0].mxu0
        %v1043 = vpop.f32.mrb[0].mxu0
        %v1044 = vadd.f32 0.0, %v1043
        %v1045 = vpop.f32.mrb[0].mxu0
        %1046 = vdwg.mxu0
        %1055 = vrot.lane.b32.xlu0 %v436, 16
        %v1056 = vpop.permute.xlu0 %1055
        %1057 = vrot.lane.b32.xlu0 %v437, 16
        %v1058 = vpop.permute.xlu0 %1057
        %1059 = vrot.lane.b32.xlu0 %v438, 16
        %v1060 = vpop.permute.xlu0 %1059
        %1061 = vrot.lane.b32.xlu0 %v439, 16
        %v1062 = vpop.permute.xlu0 %1061
        %1063 = vrot.lane.b32.xlu0 %v440, 16
        %v1064 = vpop.permute.xlu0 %1063
        %1065 = vrot.lane.b32.xlu0 %v441, 16
        %v1066 = vpop.permute.xlu0 %1065
        %1067 = vrot.lane.b32.xlu0 %v442, 16
        %v1068 = vpop.permute.xlu0 %1067
        %1069 = vrot.lane.b32.xlu0 %v443, 16
        %v1070 = vpop.permute.xlu0 %1069
        %v1079 = vsel %vm769, %v1017, %v1056
        %v1080 = vsel %vm769, %v1020, %v1058
        %v1081 = vsel %vm769, %v1025, %v1060
        %v1082 = vsel %vm769, %v1028, %v1062
        %v1083 = vsel %vm769, %v1033, %v1064
        %v1084 = vsel %vm769, %v1036, %v1066
        %v1085 = vsel %vm769, %v1041, %v1068
        %v1086 = vsel %vm769, %v1044, %v1070
        %v1087 = vld [vmem:[%s4] sm:$0x1]
        %v1089 = vlaneseq
        %v1090 = vshrl.u32 %v1089, 7
        %v1091 = vsub.s32 0, %v1090
        %v1092 = vrot.slane %v1087, %v1091
        %v1094 = vadd.f32 %v1079, %v1092
        %v1095 = vadd.f32 %v1080, %v1092
        %v1096 = vadd.f32 %v1081, %v1092
        %v1097 = vadd.f32 %v1082, %v1092
        %v1098 = vadd.f32 %v1083, %v1092
        %v1099 = vadd.f32 %v1084, %v1092
        %v1100 = vadd.f32 %v1085, %v1092
        %v1101 = vadd.f32 %v1086, %v1092
        %v1102 = vmax.f32 %v1094, 0.0
        %v1103 = vmax.f32 %v1095, 0.0
        %v1104 = vmax.f32 %v1096, 0.0
        %v1105 = vmax.f32 %v1097, 0.0
        %v1106 = vmax.f32 %v1098, 0.0
        %v1107 = vmax.f32 %v1099, 0.0
        %v1108 = vmax.f32 %v1100, 0.0
        %v1109 = vmax.f32 %v1101, 0.0
        %vm1110 = vcmask 261120
        %1111 = vst.msk [vmem:[%s291] sm:$0xff] %vm1110, %v1102
        %1112 = vst.msk [vmem:[%s291 + $0x8] sm:$0xff] %vm1110, %v1103
        %1113 = vst.msk [vmem:[%s291 + $0x10] sm:$0xff] %vm1110, %v1104
        %1114 = vst.msk [vmem:[%s291 + $0x18] sm:$0xff] %vm1110, %v1105
        %1115 = vst.msk [vmem:[%s291 + $0x20] sm:$0xff] %vm1110, %v1106
        %1116 = vst.msk [vmem:[%s291 + $0x28] sm:$0xff] %vm1110, %v1107
        %1117 = vst.msk [vmem:[%s291 + $0x30] sm:$0xff] %vm1110, %v1108
        %1118 = vst.msk [vmem:[%s291 + $0x38] sm:$0xff] %vm1110, %v1109
        %s1119 = sand.u32 %s168, 1
        %s1120 = scalar_lea.sflag [#allocation3], %s1119
        %s1121 = sand.u32 %s168, 1
        %s1122 = smul.addr %s1121, 64
        %s1123 = scalar_lea.vmem [#allocation2], %s1122
        // Predicated region
        $region41: #{down_sampling_block_forward.1} parent=39 // pred_check
          %p1124 = pneg %p178
        $region42: #{down_sampling_block_forward.1} parent=39 // pred_check_branch
          %1126 = sbr.rel (%p1124) target = $region44
        $region43: #{down_sampling_block_forward.1} parent=39 // pred_region
          %s1127 = smul.u32 8, %s24
          %s1129 = ssub.s32 1024, 1024
          %1130 = vsyncadd %s1120, %s1129
          %s1131 = smul.addr %s23, 8
          %s1132 = sadd.s32 %s1127, %s1131
          %s1133 = smul.addr %s1132, 128
          %s1134 = scalar_lea.hbm %s5, %s1133
          %s1135 = sshll.u32 %s1123, 4
          %s1136 = int_to_ptr.vmem [resolvable:$true] %s1135
          %1141 = dma.vmem_to_hbm [thread:$0]  %s1136, 1024, %s1134, %s1120, 128, 128, 8
        $region44: #{down_sampling_block_forward.1} parent=39 // pred_fallthru
          _
      $region40: #{down_sampling_block_forward.1} parent=5 // pred_fallthru
        _
      %p1142 = scmp.le.s32.totalorder 2, %s14
      // Predicated region
      $region45: #{down_sampling_block_forward.1} parent=5 // pred_check
        %p1143 = pneg %p1142
      $region46: #{down_sampling_block_forward.1} parent=5 // pred_check_branch
        %1145 = sbr.rel (%p1143) target = $region48
      $region47: #{down_sampling_block_forward.1} parent=5 // pred_region
        %s1146 = ssub.s32 %s14, 2
        // Predicated region
        $region49: #{down_sampling_block_forward.1} parent=47 // pred_check
          %p1147 = pneg %p184
        $region50: #{down_sampling_block_forward.1} parent=47 // pred_check_branch
          %1149 = sbr.rel (%p1147) target = $region52
        $region51: #{down_sampling_block_forward.1} parent=47 // pred_region
          %s1150 = sand.u32 %s169, 1
          %s1151 = scalar_lea.sflag [#allocation3], %s1150
          %s1152 = sand.u32 %s169, 1
          %s1153 = smul.addr %s1152, 64
          %s1154 = scalar_lea.vmem [#allocation2], %s1153
          %1155 = dma.done %s1151, 1024
        $region52: #{down_sampling_block_forward.1} parent=47 // pred_fallthru
          _
      $region48: #{down_sampling_block_forward.1} parent=5 // pred_fallthru
        _
    $region6: #{down_sampling_block_forward.1} parent=1 // loop_footer
      %s18 = sadd.s32 1, %s14
    $region7: #{down_sampling_block_forward.1} parent=1 // loop_footer_branch
      %13 = sbr.rel target = $region3
    $region8: #{down_sampling_block_forward.1} parent=1 // loop_exit
      _
    %1156 = vsyncpa [#allocation3], 1
    %s1157 = scalar_lea.sflag [#allocation3], 1
    %1158 = vsyncpa %s1157, 1

</llo_original>
